<compile_context>
chip_gen: v5e
topology: v5e:2x2
jax: 0.10.0
libtpu: 0.0.40
codegen_flags: <defaults>
</compile_context>

<pallas_src>
import functools

import jax
import jax.numpy as jnp
from jax import lax
from jax.experimental import pallas as pl
from jax.experimental.pallas import tpu as pltpu


def _round_up(x: int, m: int) -> int:
    return ((x + m - 1) // m) * m


def _corr_kernel(mlp_ref, gcn_ref, w_ref, o_ref, acc_ref):
    """One (row-tile i, node-tile k) step of out = (mlp @ lrelu(gcn).T) @ W + mlp."""
    k = pl.program_id(1)

    @pl.when(k == 0)
    def _():
        acc_ref[...] = jnp.zeros_like(acc_ref)

    # leaky_relu(input_gcn) tile, slope 0.1 (elementwise commutes with transpose).
    g = gcn_ref[...]
    g = jnp.where(g > 0, g, 0.1 * g)

    # x1 tile = mlp_tile @ g_tile.T  -- contract over fea_dim (last dim of both).
    s = lax.dot_general(
        mlp_ref[...], g,
        dimension_numbers=(((1,), (1,)), ((), ())),
        preferred_element_type=jnp.float32,
    )  # (tm, tk)

    # Accumulate x1_tile @ W_tile over the num_node axis.
    acc_ref[...] += jnp.dot(s, w_ref[...], preferred_element_type=jnp.float32)

    @pl.when(k == pl.num_programs(1) - 1)
    def _():
        # Residual add with input_mlp, then write the lane-dense output tile.
        o_ref[...] = (acc_ref[...] + mlp_ref[...].astype(jnp.float32)).astype(o_ref.dtype)


def correlation_layer(input_mlp, input_gcn, w, *, tm: int = 256, tk: int = 256):
    """Pallas implementation of Correlation_layer.forward.

    input_mlp: (M, fea_dim) float32
    input_gcn: (num_node, fea_dim) float32
    w        : (num_node, fea_dim) float32
    returns  : (M, fea_dim) float32
    """
    m, f = input_mlp.shape
    n, f2 = input_gcn.shape
    assert f == f2 and w.shape == (n, f), "shape mismatch with module contract"

    # Lane-dense fea_dim; sublane-aligned tiles along the row / node axes.
    fp = _round_up(f, 128)
    tm = _round_up(min(tm, _round_up(m, 8)), 8)
    tk = _round_up(min(tk, _round_up(n, 8)), 8)
    mp = _round_up(m, tm)
    np_ = _round_up(n, tk)

    # Zero-padding is exact for this op: padded fea_dim contributes 0 to x1,
    # padded num_node rows give 0 columns in x1 and zero rows in W.
    mlp_p = jnp.pad(input_mlp.astype(jnp.float32), ((0, mp - m), (0, fp - f)))
    gcn_p = jnp.pad(input_gcn.astype(jnp.float32), ((0, np_ - n), (0, fp - f)))
    w_p = jnp.pad(w.astype(jnp.float32), ((0, np_ - n), (0, fp - f)))

    grid = (mp // tm, np_ // tk)

    out_p = pl.pallas_call(
        _corr_kernel,
        out_shape=jax.ShapeDtypeStruct((mp, fp), jnp.float32),
        grid_spec=pltpu.PrefetchScalarGridSpec(
            num_scalar_prefetch=0,
            grid=grid,
            in_specs=[
                pl.BlockSpec((tm, fp), lambda i, k: (i, 0)),  # input_mlp row tile
                pl.BlockSpec((tk, fp), lambda i, k: (k, 0)),  # input_gcn node tile
                pl.BlockSpec((tk, fp), lambda i, k: (k, 0)),  # W node tile
            ],
            out_specs=pl.BlockSpec((tm, fp), lambda i, k: (i, 0)),
            scratch_shapes=[pltpu.VMEM((tm, fp), jnp.float32)],
        ),
        compiler_params=pltpu.CompilerParams(
            dimension_semantics=("parallel", "arbitrary"),
            vmem_limit_bytes=32 * 1024 * 1024,
        ),
    )(mlp_p, gcn_p, w_p)

    return out_p[:m, :f]


def correlation_layer_ref(input_mlp, input_gcn, w):
    """Pure-JAX reference for correctness checking."""
    g = jnp.where(input_gcn > 0, input_gcn, 0.1 * input_gcn)  # leaky_relu, slope 0.1
    x1 = jnp.dot(input_mlp, g.T, precision=lax.Precision.HIGHEST)
    x2 = jnp.dot(x1, w, precision=lax.Precision.HIGHEST)
    return x2 + input_mlp


if __name__ == "__main__":
    key = jax.random.PRNGKey(0)
    k1, k2, k3 = jax.random.split(key, 3)

    # Small, module-consistent shapes: M rows of mlp features, num_node, fea_dim.
    m_rows, num_node, fea_dim = 8, 16, 32

    input_mlp = jax.random.normal(k1, (m_rows, fea_dim), dtype=jnp.float32)
    input_gcn = jax.random.normal(k2, (num_node, fea_dim), dtype=jnp.float32)
    w = 0.1 * (jax.random.uniform(k3, (num_node, fea_dim), dtype=jnp.float32) - 0.5)

    out = jax.block_until_ready(correlation_layer(input_mlp, input_gcn, w))
    ref = correlation_layer_ref(input_mlp, input_gcn, w)
    assert out.shape == (m_rows, fea_dim)
    assert jnp.allclose(out, ref, atol=1e-4, rtol=1e-4)

    # Second check: shapes that exercise a multi-tile grid (row tiles + accumulation
    # over several num_node tiles, with padded tails).
    m2, n2, f2 = 24, 40, 48
    x2_in = jax.random.normal(k1, (m2, f2), dtype=jnp.float32)
    g2_in = jax.random.normal(k2, (n2, f2), dtype=jnp.float32)
    w2_in = 0.1 * (jax.random.uniform(k3, (n2, f2), dtype=jnp.float32) - 0.5)

    out2 = jax.block_until_ready(correlation_layer(x2_in, g2_in, w2_in, tm=8, tk=16))
    ref2 = correlation_layer_ref(x2_in, g2_in, w2_in)
    assert out2.shape == (m2, f2)
    assert jnp.allclose(out2, ref2, atol=1e-4, rtol=1e-4)

    print("KERNEL_OK")
</pallas_src>

<mosaic_0001>
module attributes {stable_mosaic.version = 11 : i64} {
  func.func @_corr_kernel(%arg0: i32, %arg1: i32, %arg2: memref<8x128xf32, #tpu.memory_space<vmem>>, %arg3: memref<16x128xf32, #tpu.memory_space<vmem>>, %arg4: memref<16x128xf32, #tpu.memory_space<vmem>>, %arg5: memref<8x128xf32, #tpu.memory_space<vmem>>, %arg6: memref<8x128xf32, #tpu.memory_space<vmem>>) attributes {dimension_semantics = [#tpu.dimension_semantics<parallel>, #tpu.dimension_semantics<arbitrary>], iteration_bounds = array<i64: 1, 1>, scalar_prefetch = 0 : i64, scratch_operands = 1 : i64, tpu.core_type = #tpu.core_type<tc>, window_params = [{transform_indices = @transform_0, window_bounds = array<i64: 8, 128>}, {transform_indices = @transform_1, window_bounds = array<i64: 16, 128>}, {transform_indices = @transform_2, window_bounds = array<i64: 16, 128>}, {transform_indices = @transform_3, window_bounds = array<i64: 8, 128>}]} {
    %c0_i32 = arith.constant 0 : i32
    %0 = arith.cmpi eq, %arg1, %c0_i32 : i32
    %1 = arith.extui %0 : i1 to i32
    %c0_i32_0 = arith.constant 0 : i32
    %2 = arith.cmpi ne, %1, %c0_i32_0 : i32
    scf.if %2 {
      %cst_15 = arith.constant 0.000000e+00 : f32
      %19 = vector.broadcast %cst_15 : f32 to vector<8x128xf32>
      %c0_16 = arith.constant 0 : index
      %c0_17 = arith.constant 0 : index
      %20 = vector.load %arg6[%c0_16, %c0_17] : memref<8x128xf32, #tpu.memory_space<vmem>>, vector<8x128xf32>
      tpu.vector_store %arg6[%c0_16, %c0_17], %19 {strides = array<i32>} : memref<8x128xf32, #tpu.memory_space<vmem>>, vector<8x128xf32>,
    } else {
    }
    %c0 = arith.constant 0 : index
    %c0_1 = arith.constant 0 : index
    %3 = vector.load %arg3[%c0, %c0_1] : memref<16x128xf32, #tpu.memory_space<vmem>>, vector<16x128xf32>
    %cst = arith.constant 0.000000e+00 : f32
    %4 = vector.broadcast %cst : f32 to vector<16x128xf32>
    %5 = arith.cmpf ogt, %3, %4 : vector<16x128xf32>
    %cst_2 = arith.constant 1.000000e-01 : f32
    %6 = vector.broadcast %cst_2 : f32 to vector<16x128xf32>
    %7 = arith.mulf %6, %3 : vector<16x128xf32>
    %8 = arith.select %5, %3, %7 : vector<16x128xi1>, vector<16x128xf32>
    %c0_3 = arith.constant 0 : index
    %c0_4 = arith.constant 0 : index
    %9 = vector.load %arg2[%c0_3, %c0_4] : memref<8x128xf32, #tpu.memory_space<vmem>>, vector<8x128xf32>
    %cst_5 = arith.constant dense<0.000000e+00> : vector<8x16xf32>
    %10 = tpu.matmul %9, %8, %cst_5 {dimension_numbers = #tpu.dot_dimension_numbers<[1], [1], [0], [0], [0, 0, 1, 0], [], []>} : vector<8x128xf32>, vector<16x128xf32>, vector<8x16xf32> -> vector<8x16xf32>
    %c0_6 = arith.constant 0 : index
    %c0_7 = arith.constant 0 : index
    %11 = vector.load %arg6[%c0_6, %c0_7] : memref<8x128xf32, #tpu.memory_space<vmem>>, vector<8x128xf32>
    %c0_8 = arith.constant 0 : index
    %c0_9 = arith.constant 0 : index
    %12 = vector.load %arg4[%c0_8, %c0_9] : memref<16x128xf32, #tpu.memory_space<vmem>>, vector<16x128xf32>
    %cst_10 = arith.constant dense<0.000000e+00> : vector<8x128xf32>
    %13 = tpu.matmul %10, %12, %cst_10 {dimension_numbers = #tpu.dot_dimension_numbers<[1], [0], [0], [1], [0, 0, 1, 1], [], []>} : vector<8x16xf32>, vector<16x128xf32>, vector<8x128xf32> -> vector<8x128xf32>
    %14 = arith.addf %11, %13 : vector<8x128xf32>
    %c0_11 = arith.constant 0 : index
    %c0_12 = arith.constant 0 : index
    %15 = vector.load %arg6[%c0_11, %c0_12] : memref<8x128xf32, #tpu.memory_space<vmem>>, vector<8x128xf32>
    tpu.vector_store %arg6[%c0_11, %c0_12], %14 {strides = array<i32>} : memref<8x128xf32, #tpu.memory_space<vmem>>, vector<8x128xf32>,
    %c0_i32_13 = arith.constant 0 : i32
    %16 = arith.cmpi eq, %arg1, %c0_i32_13 : i32
    %17 = arith.extui %16 : i1 to i32
    %c0_i32_14 = arith.constant 0 : i32
    %18 = arith.cmpi ne, %17, %c0_i32_14 : i32
    scf.if %18 {
      %c0_15 = arith.constant 0 : index
      %c0_16 = arith.constant 0 : index
      %19 = vector.load %arg6[%c0_15, %c0_16] : memref<8x128xf32, #tpu.memory_space<vmem>>, vector<8x128xf32>
      %c0_17 = arith.constant 0 : index
      %c0_18 = arith.constant 0 : index
      %20 = vector.load %arg2[%c0_17, %c0_18] : memref<8x128xf32, #tpu.memory_space<vmem>>, vector<8x128xf32>
      %21 = arith.addf %19, %20 : vector<8x128xf32>
      %c0_19 = arith.constant 0 : index
      %c0_20 = arith.constant 0 : index
      %22 = vector.load %arg5[%c0_19, %c0_20] : memref<8x128xf32, #tpu.memory_space<vmem>>, vector<8x128xf32>
      tpu.vector_store %arg5[%c0_19, %c0_20], %21 {strides = array<i32>} : memref<8x128xf32, #tpu.memory_space<vmem>>, vector<8x128xf32>,
    } else {
    }
    return
  }
  func.func @transform_0(%arg0: i32, %arg1: i32) -> (i32, i32) {
    %c0_i32 = arith.constant 0 : i32
    %c0_i32_0 = arith.constant 0 : i32
    return %arg0, %c0_i32 : i32, i32
  }
  func.func @transform_1(%arg0: i32, %arg1: i32) -> (i32, i32) {
    %c0_i32 = arith.constant 0 : i32
    %c0_i32_0 = arith.constant 0 : i32
    return %arg1, %c0_i32 : i32, i32
  }
  func.func @transform_2(%arg0: i32, %arg1: i32) -> (i32, i32) {
    %c0_i32 = arith.constant 0 : i32
    %c0_i32_0 = arith.constant 0 : i32
    return %arg1, %c0_i32 : i32, i32
  }
  func.func @transform_3(%arg0: i32, %arg1: i32) -> (i32, i32) {
    %c0_i32 = arith.constant 0 : i32
    %c0_i32_0 = arith.constant 0 : i32
    return %arg0, %c0_i32 : i32, i32
  }
}

</mosaic_0001>

<llo_original>
// kernel: tpu_custom_call.1
$region0: #{tpu_custom_call.1}
  #allocation0 [shape = 'u32[]', space=smem, size = 0x4, offset = 0x4, fixed_abs, tag = 'smem constant byte address 0x4 - core index']
  #allocation1 [shape = 'u32[72,128]{1,0:T(1,128)}', space=vmem, size = 0x9000, scoped, tag = 'internal scratch']
  #allocation2 [shape = 'f32[8,128]{1,0:T(8,128)}', space=vmem, size = 0x1000, scoped, tag = 'scratch operand']
  %s0 = inlined_call_operand.hbm [shape: f32[8,128], index: 0, kind: input, shape index: {}]
  %s1 = inlined_call_operand.hbm [shape: f32[16,128], index: 1, kind: input, shape index: {}]
  %s2 = inlined_call_operand.hbm [shape: f32[16,128], index: 2, kind: input, shape index: {}]
  %s3 = inlined_call_operand.hbm [shape: f32[8,128], index: 3, kind: output, shape index: {}]
  %s4 = sld [smem:[#allocation0]]
  $region42: #{tpu_custom_call.1} parent=0
    _
  %s6 = ssub.s32 1, %s4
  %s7 = scalar_select 0, %s6, %s4
  $region1: #{tpu_custom_call.1} parent=0
    #allocation3 [shape = 'u8[4096]{0}', space=vmem, size = 0x1000, scoped, tag = 'input window, operand 0, single buffered']
    #allocation4 [shape = 's32[1]{0}', space=sflag, size = 0x4, scoped, tag = 'scoped memory for tpu_custom_call.1']
    #allocation5 [shape = 's32[1]{0}', space=sflag, size = 0x4, scoped, tag = 'scoped memory for tpu_custom_call.1']
    #allocation6 [shape = 'u8[8192]{0}', space=vmem, size = 0x2000, scoped, tag = 'input window, operand 1, single buffered']
    #allocation7 [shape = 's32[1]{0}', space=sflag, size = 0x4, scoped, tag = 'scoped memory for tpu_custom_call.1']
    #allocation8 [shape = 'u8[8192]{0}', space=vmem, size = 0x2000, scoped, tag = 'input window, operand 2, single buffered']
    #allocation9 [shape = 'u8[4096]{0}', space=vmem, size = 0x1000, scoped, tag = 'output window, operand 0, single buffered']
    %8 = vsyncpa [#allocation4], 0
    %9 = vsyncpa [#allocation7], 0
    %10 = vsyncpa [#allocation5], 0
    // Predicated region
    $region2: #{tpu_custom_call.1} parent=1 // pred_check
      _
    $region3: #{tpu_custom_call.1} parent=1 // pred_check_branch
      %12 = sbr.rel (0) target = $region5
    $region4: #{tpu_custom_call.1} parent=1 // pred_region
      %14 = vsyncadd [#allocation4], 0
      %s16 = sshll.u32 %s0, 4
      %s17 = int_to_ptr.hbm [resolvable:$true] %s16
      %s18 = sshll.u32 [#allocation3], 4
      %s19 = int_to_ptr.vmem [resolvable:$true] %s18
      %21 = dma.hbm_to_vmem [thread:$0]  %s17, 128, %s19, [#allocation4]
    $region5: #{tpu_custom_call.1} parent=1 // pred_fallthru
      _
    // Predicated region
    $region6: #{tpu_custom_call.1} parent=1 // pred_check
      _
    $region7: #{tpu_custom_call.1} parent=1 // pred_check_branch
      %23 = sbr.rel (0) target = $region9
    $region8: #{tpu_custom_call.1} parent=1 // pred_region
      %25 = vsyncadd [#allocation7], 0
      %s26 = sshll.u32 %s1, 4
      %s27 = int_to_ptr.hbm [resolvable:$true] %s26
      %s28 = sshll.u32 [#allocation6], 4
      %s29 = int_to_ptr.vmem [resolvable:$true] %s28
      %34 = dma.hbm_to_vmem [thread:$0]  %s27, 256, %s29, [#allocation7], 128, 128, 8
    $region9: #{tpu_custom_call.1} parent=1 // pred_fallthru
      _
    // Predicated region
    $region10: #{tpu_custom_call.1} parent=1 // pred_check
      _
    $region11: #{tpu_custom_call.1} parent=1 // pred_check_branch
      %36 = sbr.rel (0) target = $region13
    $region12: #{tpu_custom_call.1} parent=1 // pred_region
      %38 = vsyncadd [#allocation7], 0
      %s39 = sshll.u32 %s2, 4
      %s40 = int_to_ptr.hbm [resolvable:$true] %s39
      %s41 = sshll.u32 [#allocation8], 4
      %s42 = int_to_ptr.vmem [resolvable:$true] %s41
      %47 = dma.hbm_to_vmem [thread:$0]  %s40, 256, %s42, [#allocation7], 128, 128, 8
    $region13: #{tpu_custom_call.1} parent=1 // pred_fallthru
      _
    // Predicated region
    $region14: #{tpu_custom_call.1} parent=1 // pred_check
      _
    $region15: #{tpu_custom_call.1} parent=1 // pred_check_branch
      %49 = sbr.rel (0) target = $region17
    $region16: #{tpu_custom_call.1} parent=1 // pred_region
      %51 = dma.done [#allocation4], 128
    $region17: #{tpu_custom_call.1} parent=1 // pred_fallthru
      _
    // Predicated region
    $region18: #{tpu_custom_call.1} parent=1 // pred_check
      _
    $region19: #{tpu_custom_call.1} parent=1 // pred_check_branch
      %53 = sbr.rel (0) target = $region21
    $region20: #{tpu_custom_call.1} parent=1 // pred_region
      %55 = dma.done [#allocation7], 256
    $region21: #{tpu_custom_call.1} parent=1 // pred_fallthru
      _
    // Predicated region
    $region22: #{tpu_custom_call.1} parent=1 // pred_check
      _
    $region23: #{tpu_custom_call.1} parent=1 // pred_check_branch
      %57 = sbr.rel (0) target = $region25
    $region24: #{tpu_custom_call.1} parent=1 // pred_region
      %59 = dma.done [#allocation7], 256
    $region25: #{tpu_custom_call.1} parent=1 // pred_fallthru
      _
    %p60 = scmp.eq.s32.totalorder 0, 0
    // Predicated region
    $region26: #{tpu_custom_call.1} parent=1 // pred_check
      %p61 = pneg %p60
    $region27: #{tpu_custom_call.1} parent=1 // pred_check_branch
      %63 = sbr.rel (%p61) target = $region29
    $region28: #{tpu_custom_call.1} parent=1 // pred_region
      %64 = vst [vmem:[#allocation2] sm:$0xff] 0.0
    $region29: #{tpu_custom_call.1} parent=1 // pred_fallthru
      _
    %v65 = vld [vmem:[#allocation6] sm:$0xff]
    %v66 = vld [vmem:[#allocation6 + $0x8] sm:$0xff]
    %vm67 = vcmp.gt.f32.partialorder %v65, 0.0
    %vm68 = vcmp.gt.f32.partialorder %v66, 0.0
    %v69 = vmul.f32 %v65, 0.1
    %v70 = vmul.f32 %v66, 0.1
    %v71 = vsel %vm67, %v65, %v69
    %v72 = vsel %vm68, %v66, %v70
    %v73 = vld [vmem:[#allocation3] sm:$0xff]
    %74 = vmatpush.xpose.msra.mxu0 0.0
    %75 = vmatpush.xpose.msra.mxu0 0.0
    %76 = vmatpush.xpose.msra.mxu0 0.0
    %77 = vmatpush.xpose.msra.mxu0 0.0
    %78 = vmatpush.xpose.msra.mxu0 0.0
    %79 = vmatpush.xpose.msra.mxu0 0.0
    %80 = vmatpush.xpose.msra.mxu0 0.0
    %81 = vmatpush.xpose.msra.mxu0 0.0
    %82 = vmatpush.xpose.msra.mxu0 0.0
    %83 = vmatpush.xpose.msra.mxu0 0.0
    %84 = vmatpush.xpose.msra.mxu0 0.0
    %85 = vmatpush.xpose.msra.mxu0 0.0
    %86 = vmatpush.xpose.msra.mxu0 0.0
    %87 = vmatpush.xpose.msra.mxu0 0.0
    %88 = vmatpush.xpose.msra.mxu0 %v72
    %89 = vmatpush.xpose.msra.mxu0 %v71
    %90 = vmatmul.f32.gmra.mxu0 %v73
    %v91 = vpop.f32.mrf.mxu0
    %v92 = vadd.f32 0.0, %v91
    %93 = vdwg.mxu0
    %v94 = vld [vmem:[#allocation2] sm:$0xff]
    %v95 = vld [vmem:[#allocation8] sm:$0xff]
    %v96 = vld [vmem:[#allocation8 + $0x8] sm:$0xff]
    %vm97 = vcmask 130048
    %v99 = vsel %vm97, %v92, 0
    %101 = vmatpush.msra.mxu0 0.0
    %102 = vmatpush.msra.mxu0 0.0
    %103 = vmatpush.msra.mxu0 0.0
    %104 = vmatpush.msra.mxu0 0.0
    %105 = vmatpush.msra.mxu0 0.0
    %106 = vmatpush.msra.mxu0 0.0
    %107 = vmatpush.msra.mxu0 0.0
    %108 = vmatpush.msra.mxu0 0.0
    %109 = vmatpush.msra.mxu0 0.0
    %110 = vmatpush.msra.mxu0 0.0
    %111 = vmatpush.msra.mxu0 0.0
    %112 = vmatpush.msra.mxu0 0.0
    %113 = vmatpush.msra.mxu0 0.0
    %114 = vmatpush.msra.mxu0 0.0
    %115 = vmatpush.msra.mxu0 %v96
    %116 = vmatpush.msra.mxu0 %v95
    %117 = vmatmul.f32.gmra.mxu0 %v99
    %v118 = vpop.f32.mrf.mxu0
    %v119 = vadd.f32 0.0, %v118
    %120 = vdwg.mxu0
    %v121 = vadd.f32 %v94, %v119
    %122 = vst [vmem:[#allocation2] sm:$0xff] %v121
    // Predicated region
    $region30: #{tpu_custom_call.1} parent=1 // pred_check
      %p123 = pneg %p60
    $region31: #{tpu_custom_call.1} parent=1 // pred_check_branch
      %125 = sbr.rel (%p123) target = $region33
    $region32: #{tpu_custom_call.1} parent=1 // pred_region
      %v126 = vld [vmem:[#allocation2] sm:$0xff]
      %v127 = vld [vmem:[#allocation3] sm:$0xff]
      %v128 = vadd.f32 %v126, %v127
      %129 = vst [vmem:[#allocation9] sm:$0xff] %v128
    $region33: #{tpu_custom_call.1} parent=1 // pred_fallthru
      _
    // Predicated region
    $region34: #{tpu_custom_call.1} parent=1 // pred_check
      _
    $region35: #{tpu_custom_call.1} parent=1 // pred_check_branch
      %131 = sbr.rel (0) target = $region37
    $region36: #{tpu_custom_call.1} parent=1 // pred_region
      %133 = vsyncadd [#allocation5], 0
      %s135 = sshll.u32 [#allocation9], 4
      %s136 = int_to_ptr.vmem [resolvable:$true] %s135
      %s137 = sshll.u32 %s3, 4
      %s138 = int_to_ptr.hbm [resolvable:$true] %s137
      %140 = dma.vmem_to_hbm [thread:$0]  %s136, 128, %s138, [#allocation5]
    $region37: #{tpu_custom_call.1} parent=1 // pred_fallthru
      _
    // Predicated region
    $region38: #{tpu_custom_call.1} parent=1 // pred_check
      _
    $region39: #{tpu_custom_call.1} parent=1 // pred_check_branch
      %142 = sbr.rel (0) target = $region41
    $region40: #{tpu_custom_call.1} parent=1 // pred_region
      %144 = dma.done [#allocation5], 128
    $region41: #{tpu_custom_call.1} parent=1 // pred_fallthru
      _
    %145 = vsyncpa [#allocation4], 1
    %146 = vsyncpa [#allocation7], 1
    %147 = vsyncpa [#allocation5], 1

</llo_original>
